<compile_context>
chip_gen: v7x
topology: tpu7x:2x2x1
jax: 0.10.0
libtpu: 0.0.40
codegen_flags: <defaults>
</compile_context>

<pallas_src>
import functools

import jax
import jax.numpy as jnp
from jax.experimental import pallas as pl
from jax.experimental.pallas import tpu as pltpu


LN_EPS = 1e-5  # torch.nn.LayerNorm default
_MIB = 1024 * 1024


def _erf_f32(x):
    # Abramowitz & Stegun 7.1.26 rational approximation (max abs err ~1.5e-7 in f32 divide;
    # the approx EUP reciprocal lowers that a bit, still well inside the bf16-MXU tolerance).
    a1, a2, a3, a4, a5 = 0.254829592, -0.284496736, 1.421413741, -1.453152027, 1.061405429
    p = 0.3275911
    sign = jnp.where(x >= 0.0, 1.0, -1.0)
    ax = jnp.abs(x)
    t = pl.reciprocal(1.0 + p * ax, approx=True)   # EUP slot, keeps VALU free
    poly = ((((a5 * t + a4) * t + a3) * t + a2) * t + a1) * t
    y = 1.0 - poly * jnp.exp(-ax * ax)
    return sign * y


def _gelu_exact(x):
    # Exact (erf-based) GELU, matching torch.nn.GELU() default.
    return 0.5 * x * (1.0 + _erf_f32(x * 0.7071067811865476))


def _ffn_kernel(x_ref, g_ref, b_ref, w1_ref, b1_ref, w2_ref, b2_ref,
                o_ref, acc_ref, y_ref):
    j = pl.program_id(1)

    @pl.when(j == 0)
    def _():
        # LayerNorm once per row tile; keep normalized activations in bf16 scratch
        # and reuse them for every hidden-dim slab.
        x = x_ref[...].astype(jnp.float32)                      # (TM, D)
        mean = jnp.mean(x, axis=-1, keepdims=True)
        xc = x - mean
        var = jnp.mean(xc * xc, axis=-1, keepdims=True)
        y = xc * jax.lax.rsqrt(var + LN_EPS)
        y = y * g_ref[...] + b_ref[...]
        y_ref[...] = y.astype(jnp.bfloat16)
        acc_ref[...] = jnp.zeros_like(acc_ref)

    # Linear(dim -> th) slab + exact GELU (bf16 MXU operands, f32 math).
    h = jnp.dot(y_ref[...], w1_ref[...],
                preferred_element_type=jnp.float32) + b1_ref[...]   # (TM, TH)
    h = _gelu_exact(h)

    # Accumulate this slab's contribution of Linear(hidden -> dim).
    acc_ref[...] += jnp.dot(h.astype(jnp.bfloat16), w2_ref[...],
                            preferred_element_type=jnp.float32)

    @pl.when(j == pl.num_programs(1) - 1)
    def _():
        o_ref[...] = (acc_ref[...] + b2_ref[...]).astype(o_ref.dtype)


def _round_up(n, m):
    return ((n + m - 1) // m) * m


def _device_config():
    """Per-TPU-generation tiling defaults (row tile = arithmetic-intensity knob)."""
    try:
        kind = jax.devices()[0].device_kind.lower()
    except Exception:
        kind = ""
    if "v7" in kind:
        # 64 MiB VMEM, 2 TensorCores: smaller hidden slab + bf16 activations to fit tm=512.
        return dict(tile_m=512, tile_h=256, vmem_limit=48 * _MIB,
                    cast_input_bf16=True, want_two_row_tiles=True)
    if "v6" in kind:
        # 128 MiB VMEM, fastest MXU: tm=1024 to clear the ~600 FLOP/B ridge.
        return dict(tile_m=1024, tile_h=512, vmem_limit=110 * _MIB,
                    cast_input_bf16=False, want_two_row_tiles=False)
    if "v5" in kind:
        return dict(tile_m=512, tile_h=512, vmem_limit=100 * _MIB,
                    cast_input_bf16=False, want_two_row_tiles=False)
    # Unknown generation: conservative.
    return dict(tile_m=512, tile_h=512, vmem_limit=48 * _MIB,
                cast_input_bf16=False, want_two_row_tiles=False)


def _pick_tile_m(N, target, want_two_row_tiles):
    """Row tile + padded row count. Prefers no padding and 128-multiple tiles."""
    if N <= target:
        if want_two_row_tiles and N >= 256 and N % 256 == 0:
            return N // 2, N      # two equal 128-multiple row tiles -> both v7x TCs busy
        return N, N               # single full-extent tile (exempt from the (8,128) rule)
    # N > target: largest multiple-of-128 tile <= target that divides N exactly (no padding).
    for tm in range(target, 127, -128):
        if N % tm == 0:
            return tm, N
    # Fallback: pad rows (extra HBM traffic; rare for transformer-shaped N).
    return target, _round_up(N, target)


def _pick_tile_h(H, target):
    """Hidden tile + padded hidden dim. Padded weight columns contribute exactly 0."""
    for th in (target, 512, 256, 128):
        if th <= target and H % th == 0:
            return th, H
    th = min(target, _round_up(H, 128))
    return th, _round_up(H, th)


@functools.partial(
    jax.jit,
    static_argnames=("tm", "n_pad", "th", "h_pad", "vmem_limit", "cast_input_bf16"))
def _feed_forward_impl(x2d, gamma, beta, w1, b1, w2, b2, *,
                       tm, n_pad, th, h_pad, vmem_limit, cast_input_bf16):
    N, D = x2d.shape
    H = w1.shape[1]
    out_dtype = x2d.dtype

    if cast_input_bf16 and x2d.dtype != jnp.bfloat16:
        x2d = x2d.astype(jnp.bfloat16)          # v7x: halve activation VMEM footprint
    if n_pad != N:
        x2d = jnp.pad(x2d, ((0, n_pad - N), (0, 0)))

    # bf16 MXU operands (f32 accumulation in-kernel).  Zero-pad the hidden dim so W1/W2
    # stream as fixed (D, th)/(th, D) slabs; padded columns flow 0 -> GELU(0)=0 -> 0.
    # (In production, pre-pad/cast the weights once outside the hot path.)
    w1b = w1.astype(jnp.bfloat16)
    w2b = w2.astype(jnp.bfloat16)
    if h_pad != H:
        w1b = jnp.pad(w1b, ((0, 0), (0, h_pad - H)))
        b1 = jnp.pad(b1, ((0, 0), (0, h_pad - H)))
        w2b = jnp.pad(w2b, ((0, h_pad - H), (0, 0)))

    grid = (n_pad // tm, h_pad // th)

    out2d = pl.pallas_call(
        _ffn_kernel,
        out_shape=jax.ShapeDtypeStruct((n_pad, D), out_dtype),
        grid_spec=pltpu.PrefetchScalarGridSpec(
            num_scalar_prefetch=0,
            grid=grid,
            in_specs=[
                pl.BlockSpec((tm, D), lambda i, j: (i, 0)),    # x row tile
                pl.BlockSpec((1, D), lambda i, j: (0, 0)),     # LN gamma
                pl.BlockSpec((1, D), lambda i, j: (0, 0)),     # LN beta
                pl.BlockSpec((D, th), lambda i, j: (0, j)),    # W1 hidden slab
                pl.BlockSpec((1, th), lambda i, j: (0, j)),    # b1 hidden slab
                pl.BlockSpec((th, D), lambda i, j: (j, 0)),    # W2 hidden slab
                pl.BlockSpec((1, D), lambda i, j: (0, 0)),     # b2
            ],
            out_specs=pl.BlockSpec((tm, D), lambda i, j: (i, 0)),
            scratch_shapes=[
                pltpu.VMEM((tm, D), jnp.float32),    # second-matmul accumulator
                pltpu.VMEM((tm, D), jnp.bfloat16),   # LayerNorm output, reused per h-slab
            ],
        ),
        compiler_params=pltpu.CompilerParams(
            dimension_semantics=("parallel", "arbitrary"),
            vmem_limit_bytes=vmem_limit,
        ),
    )(x2d, gamma, beta, w1b, b1, w2b, b2)

    if n_pad != N:
        out2d = out2d[:N]
    return out2d


def feed_forward(x, gamma, beta, w1, b1, w2, b2, *, tile_m=None, tile_h=None):
    """x: (B, S, dim). w1: (dim, hidden), w2: (hidden, dim) — (in, out) layout, kernel does y @ W.
    Dropout(p=0.0) is the identity and is omitted."""
    B, S, D = x.shape
    H = w1.shape[1]
    N = B * S

    cfg = _device_config()
    tm_target = max(128, _round_up(tile_m if tile_m is not None else cfg["tile_m"], 128))
    th_target = max(128, _round_up(tile_h if tile_h is not None else cfg["tile_h"], 128))

    tm, n_pad = _pick_tile_m(N, tm_target, cfg["want_two_row_tiles"])
    th, h_pad = _pick_tile_h(H, th_target)

    out2d = _feed_forward_impl(
        x.reshape(N, D), gamma, beta, w1, b1, w2, b2,
        tm=tm, n_pad=n_pad, th=th, h_pad=h_pad,
        vmem_limit=cfg["vmem_limit"], cast_input_bf16=cfg["cast_input_bf16"])
    return out2d.reshape(B, S, D)


def _reference(x, gamma, beta, w1, b1, w2, b2):
    mean = jnp.mean(x, axis=-1, keepdims=True)
    var = jnp.mean((x - mean) ** 2, axis=-1, keepdims=True)
    y = (x - mean) * jax.lax.rsqrt(var + LN_EPS) * gamma + beta
    h = jax.nn.gelu(y @ w1 + b1[0], approximate=False)
    return h @ w2 + b2[0]


if __name__ == "__main__":
    B, S, D, HID = 2, 8, 32, 64

    key = jax.random.PRNGKey(0)
    kx, kg, kb, kw1, kb1, kw2, kb2 = jax.random.split(key, 7)

    x = jax.random.normal(kx, (B, S, D), dtype=jnp.float32)

    # Deterministic synthetic parameters (shapes match nn.LayerNorm(D),
    # nn.Linear(D, HID), nn.Linear(HID, D)). Linear weights stored transposed
    # as (in, out) for the kernel's y @ W convention.
    gamma = (1.0 + 0.1 * jax.random.normal(kg, (1, D))).astype(jnp.float32)
    beta = (0.1 * jax.random.normal(kb, (1, D))).astype(jnp.float32)
    w1 = (jax.random.normal(kw1, (D, HID)) / jnp.sqrt(D)).astype(jnp.float32)
    b1 = (0.1 * jax.random.normal(kb1, (1, HID))).astype(jnp.float32)
    w2 = (jax.random.normal(kw2, (HID, D)) / jnp.sqrt(HID)).astype(jnp.float32)
    b2 = (0.1 * jax.random.normal(kb2, (1, D))).astype(jnp.float32)

    out = feed_forward(x, gamma, beta, w1, b1, w2, b2)
    out = jax.block_until_ready(out)

    ref = _reference(x, gamma, beta, w1, b1, w2, b2)
    assert out.shape == (B, S, D)
    # bf16 MXU operands (f32 accumulation) -> ~1e-2-level deviation vs the f32 reference.
    assert jnp.allclose(out, ref, atol=5e-2, rtol=5e-2), float(jnp.max(jnp.abs(out - ref)))

    print("KERNEL_OK")
</pallas_src>

<mosaic_0001>
module attributes {stable_mosaic.version = 11 : i64} {
  func.func @_ffn_kernel(%arg0: i32, %arg1: i32, %arg2: memref<16x32xf32, #tpu.memory_space<vmem>>, %arg3: memref<1x32xf32, #tpu.memory_space<vmem>>, %arg4: memref<1x32xf32, #tpu.memory_space<vmem>>, %arg5: memref<32x128xbf16, #tpu.memory_space<vmem>>, %arg6: memref<1x128xf32, #tpu.memory_space<vmem>>, %arg7: memref<128x32xbf16, #tpu.memory_space<vmem>>, %arg8: memref<1x32xf32, #tpu.memory_space<vmem>>, %arg9: memref<16x32xf32, #tpu.memory_space<vmem>>, %arg10: memref<16x32xf32, #tpu.memory_space<vmem>>, %arg11: memref<16x32xbf16, #tpu.memory_space<vmem>>) attributes {dimension_semantics = [#tpu.dimension_semantics<parallel>, #tpu.dimension_semantics<arbitrary>], iteration_bounds = array<i64: 1, 1>, scalar_prefetch = 0 : i64, scratch_operands = 2 : i64, tpu.core_type = #tpu.core_type<tc>, window_params = [{transform_indices = @transform_0, window_bounds = array<i64: 16, 32>}, {pipeline_mode = #tpu.pipeline_mode<synchronous>, transform_indices = @transform_1, window_bounds = array<i64: 1, 32>}, {pipeline_mode = #tpu.pipeline_mode<synchronous>, transform_indices = @transform_2, window_bounds = array<i64: 1, 32>}, {transform_indices = @transform_3, window_bounds = array<i64: 32, 128>}, {transform_indices = @transform_4, window_bounds = array<i64: 1, 128>}, {transform_indices = @transform_5, window_bounds = array<i64: 128, 32>}, {pipeline_mode = #tpu.pipeline_mode<synchronous>, transform_indices = @transform_6, window_bounds = array<i64: 1, 32>}, {transform_indices = @transform_7, window_bounds = array<i64: 16, 32>}]} {
    %c0_i32 = arith.constant 0 : i32
    %0 = arith.cmpi eq, %arg1, %c0_i32 : i32
    %1 = arith.extui %0 : i1 to i32
    %c0_i32_0 = arith.constant 0 : i32
    %2 = arith.cmpi ne, %1, %c0_i32_0 : i32
    scf.if %2 {
      %c0_30 = arith.constant 0 : index
      %c0_31 = arith.constant 0 : index
      %58 = vector.load %arg2[%c0_30, %c0_31] : memref<16x32xf32, #tpu.memory_space<vmem>>, vector<16x32xf32>
      %cst_32 = arith.constant dense<0.000000e+00> : vector<16xf32>
      %59 = vector.multi_reduction <add>, %58, %cst_32 [1] : vector<16x32xf32> to vector<16xf32>
      %60 = vector.shape_cast %59 : vector<16xf32> to vector<16x1xf32>
      %cst_33 = arith.constant 3.200000e+01 : f32
      %61 = vector.broadcast %cst_33 : f32 to vector<16x1xf32>
      %62 = arith.divf %60, %61 : vector<16x1xf32>
      %63 = vector.broadcast %62 : vector<16x1xf32> to vector<16x32xf32>
      %64 = arith.subf %58, %63 : vector<16x32xf32>
      %65 = arith.mulf %64, %64 : vector<16x32xf32>
      %cst_34 = arith.constant dense<0.000000e+00> : vector<16xf32>
      %66 = vector.multi_reduction <add>, %65, %cst_34 [1] : vector<16x32xf32> to vector<16xf32>
      %67 = vector.shape_cast %66 : vector<16xf32> to vector<16x1xf32>
      %cst_35 = arith.constant 3.200000e+01 : f32
      %68 = vector.broadcast %cst_35 : f32 to vector<16x1xf32>
      %69 = arith.divf %67, %68 : vector<16x1xf32>
      %cst_36 = arith.constant 9.99999974E-6 : f32
      %70 = vector.broadcast %cst_36 : f32 to vector<16x1xf32>
      %71 = arith.addf %69, %70 : vector<16x1xf32>
      %72 = math.rsqrt %71 : vector<16x1xf32>
      %73 = vector.broadcast %72 : vector<16x1xf32> to vector<16x32xf32>
      %74 = arith.mulf %64, %73 : vector<16x32xf32>
      %c0_37 = arith.constant 0 : index
      %c0_38 = arith.constant 0 : index
      %75 = vector.load %arg3[%c0_37, %c0_38] : memref<1x32xf32, #tpu.memory_space<vmem>>, vector<1x32xf32>
      %76 = vector.broadcast %75 : vector<1x32xf32> to vector<16x32xf32>
      %77 = arith.mulf %74, %76 : vector<16x32xf32>
      %c0_39 = arith.constant 0 : index
      %c0_40 = arith.constant 0 : index
      %78 = vector.load %arg4[%c0_39, %c0_40] : memref<1x32xf32, #tpu.memory_space<vmem>>, vector<1x32xf32>
      %79 = vector.broadcast %78 : vector<1x32xf32> to vector<16x32xf32>
      %80 = arith.addf %77, %79 : vector<16x32xf32>
      %81 = arith.truncf %80 : vector<16x32xf32> to vector<16x32xbf16>
      %c0_41 = arith.constant 0 : index
      %c0_42 = arith.constant 0 : index
      %82 = vector.load %arg11[%c0_41, %c0_42] : memref<16x32xbf16, #tpu.memory_space<vmem>>, vector<16x32xbf16>
      tpu.vector_store %arg11[%c0_41, %c0_42], %81 {strides = array<i32>} : memref<16x32xbf16, #tpu.memory_space<vmem>>, vector<16x32xbf16>,
      %cst_43 = arith.constant 0.000000e+00 : f32
      %83 = vector.broadcast %cst_43 : f32 to vector<16x32xf32>
      %c0_44 = arith.constant 0 : index
      %c0_45 = arith.constant 0 : index
      %84 = vector.load %arg10[%c0_44, %c0_45] : memref<16x32xf32, #tpu.memory_space<vmem>>, vector<16x32xf32>
      tpu.vector_store %arg10[%c0_44, %c0_45], %83 {strides = array<i32>} : memref<16x32xf32, #tpu.memory_space<vmem>>, vector<16x32xf32>,
    } else {
    }
    %c0 = arith.constant 0 : index
    %c0_1 = arith.constant 0 : index
    %3 = vector.load %arg11[%c0, %c0_1] : memref<16x32xbf16, #tpu.memory_space<vmem>>, vector<16x32xbf16>
    %c0_2 = arith.constant 0 : index
    %c0_3 = arith.constant 0 : index
    %4 = vector.load %arg5[%c0_2, %c0_3] : memref<32x128xbf16, #tpu.memory_space<vmem>>, vector<32x128xbf16>
    %cst = arith.constant dense<0.000000e+00> : vector<16x128xf32>
    %5 = tpu.matmul %3, %4, %cst {dimension_numbers = #tpu.dot_dimension_numbers<[1], [0], [0], [1], [0, 0, 1, 1], [], []>} : vector<16x32xbf16>, vector<32x128xbf16>, vector<16x128xf32> -> vector<16x128xf32>
    %c0_4 = arith.constant 0 : index
    %c0_5 = arith.constant 0 : index
    %6 = vector.load %arg6[%c0_4, %c0_5] : memref<1x128xf32, #tpu.memory_space<vmem>>, vector<1x128xf32>
    %7 = vector.broadcast %6 : vector<1x128xf32> to vector<16x128xf32>
    %8 = arith.addf %5, %7 : vector<16x128xf32>
    %cst_6 = arith.constant 5.000000e-01 : f32
    %9 = vector.broadcast %cst_6 : f32 to vector<16x128xf32>
    %10 = arith.mulf %9, %8 : vector<16x128xf32>
    %cst_7 = arith.constant 0.707106769 : f32
    %11 = vector.broadcast %cst_7 : f32 to vector<16x128xf32>
    %12 = arith.mulf %8, %11 : vector<16x128xf32>
    %cst_8 = arith.constant 0.000000e+00 : f32
    %13 = vector.broadcast %cst_8 : f32 to vector<16x128xf32>
    %14 = arith.cmpf oge, %12, %13 : vector<16x128xf32>
    %cst_9 = arith.constant 1.000000e+00 : f32
    %cst_10 = arith.constant -1.000000e+00 : f32
    %15 = vector.broadcast %cst_9 : f32 to vector<16x128xf32>
    %16 = vector.broadcast %cst_10 : f32 to vector<16x128xf32>
    %17 = arith.select %14, %15, %16 : vector<16x128xi1>, vector<16x128xf32>
    %18 = math.absf %12 : vector<16x128xf32>
    %cst_11 = arith.constant 0.327591091 : f32
    %19 = vector.broadcast %cst_11 : f32 to vector<16x128xf32>
    %20 = arith.mulf %19, %18 : vector<16x128xf32>
    %cst_12 = arith.constant 1.000000e+00 : f32
    %21 = vector.broadcast %cst_12 : f32 to vector<16x128xf32>
    %22 = arith.addf %21, %20 : vector<16x128xf32>
    %23 = tpu.reciprocal %22 {approx = true} : vector<16x128xf32> -> vector<16x128xf32>
    %cst_13 = arith.constant 1.06140542 : f32
    %24 = vector.broadcast %cst_13 : f32 to vector<16x128xf32>
    %25 = arith.mulf %24, %23 : vector<16x128xf32>
    %cst_14 = arith.constant -1.45315206 : f32
    %26 = vector.broadcast %cst_14 : f32 to vector<16x128xf32>
    %27 = arith.addf %25, %26 : vector<16x128xf32>
    %28 = arith.mulf %27, %23 : vector<16x128xf32>
    %cst_15 = arith.constant 1.42141378 : f32
    %29 = vector.broadcast %cst_15 : f32 to vector<16x128xf32>
    %30 = arith.addf %28, %29 : vector<16x128xf32>
    %31 = arith.mulf %30, %23 : vector<16x128xf32>
    %cst_16 = arith.constant -0.284496725 : f32
    %32 = vector.broadcast %cst_16 : f32 to vector<16x128xf32>
    %33 = arith.addf %31, %32 : vector<16x128xf32>
    %34 = arith.mulf %33, %23 : vector<16x128xf32>
    %cst_17 = arith.constant 0.254829586 : f32
    %35 = vector.broadcast %cst_17 : f32 to vector<16x128xf32>
    %36 = arith.addf %34, %35 : vector<16x128xf32>
    %37 = arith.mulf %36, %23 : vector<16x128xf32>
    %cst_18 = arith.constant 0.000000e+00 : f32
    %38 = vector.broadcast %cst_18 : f32 to vector<16x128xf32>
    %39 = arith.subf %38, %18 : vector<16x128xf32>
    %40 = arith.mulf %39, %18 : vector<16x128xf32>
    %41 = math.exp %40 : vector<16x128xf32>
    %42 = arith.mulf %37, %41 : vector<16x128xf32>
    %cst_19 = arith.constant 1.000000e+00 : f32
    %43 = vector.broadcast %cst_19 : f32 to vector<16x128xf32>
    %44 = arith.subf %43, %42 : vector<16x128xf32>
    %45 = arith.mulf %17, %44 : vector<16x128xf32>
    %cst_20 = arith.constant 1.000000e+00 : f32
    %46 = vector.broadcast %cst_20 : f32 to vector<16x128xf32>
    %47 = arith.addf %46, %45 : vector<16x128xf32>
    %48 = arith.mulf %10, %47 : vector<16x128xf32>
    %c0_21 = arith.constant 0 : index
    %c0_22 = arith.constant 0 : index
    %49 = vector.load %arg10[%c0_21, %c0_22] : memref<16x32xf32, #tpu.memory_space<vmem>>, vector<16x32xf32>
    %50 = arith.truncf %48 : vector<16x128xf32> to vector<16x128xbf16>
    %c0_23 = arith.constant 0 : index
    %c0_24 = arith.constant 0 : index
    %51 = vector.load %arg7[%c0_23, %c0_24] : memref<128x32xbf16, #tpu.memory_space<vmem>>, vector<128x32xbf16>
    %cst_25 = arith.constant dense<0.000000e+00> : vector<16x32xf32>
    %52 = tpu.matmul %50, %51, %cst_25 {dimension_numbers = #tpu.dot_dimension_numbers<[1], [0], [0], [1], [0, 0, 1, 1], [], []>} : vector<16x128xbf16>, vector<128x32xbf16>, vector<16x32xf32> -> vector<16x32xf32>
    %53 = arith.addf %49, %52 : vector<16x32xf32>
    %c0_26 = arith.constant 0 : index
    %c0_27 = arith.constant 0 : index
    %54 = vector.load %arg10[%c0_26, %c0_27] : memref<16x32xf32, #tpu.memory_space<vmem>>, vector<16x32xf32>
    tpu.vector_store %arg10[%c0_26, %c0_27], %53 {strides = array<i32>} : memref<16x32xf32, #tpu.memory_space<vmem>>, vector<16x32xf32>,
    %c0_i32_28 = arith.constant 0 : i32
    %55 = arith.cmpi eq, %arg1, %c0_i32_28 : i32
    %56 = arith.extui %55 : i1 to i32
    %c0_i32_29 = arith.constant 0 : i32
    %57 = arith.cmpi ne, %56, %c0_i32_29 : i32
    scf.if %57 {
      %c0_30 = arith.constant 0 : index
      %c0_31 = arith.constant 0 : index
      %58 = vector.load %arg10[%c0_30, %c0_31] : memref<16x32xf32, #tpu.memory_space<vmem>>, vector<16x32xf32>
      %c0_32 = arith.constant 0 : index
      %c0_33 = arith.constant 0 : index
      %59 = vector.load %arg8[%c0_32, %c0_33] : memref<1x32xf32, #tpu.memory_space<vmem>>, vector<1x32xf32>
      %60 = vector.broadcast %59 : vector<1x32xf32> to vector<16x32xf32>
      %61 = arith.addf %58, %60 : vector<16x32xf32>
      %c0_34 = arith.constant 0 : index
      %c0_35 = arith.constant 0 : index
      %62 = vector.load %arg9[%c0_34, %c0_35] : memref<16x32xf32, #tpu.memory_space<vmem>>, vector<16x32xf32>
      tpu.vector_store %arg9[%c0_34, %c0_35], %61 {strides = array<i32>} : memref<16x32xf32, #tpu.memory_space<vmem>>, vector<16x32xf32>,
    } else {
    }
    return
  }
  func.func @transform_0(%arg0: i32, %arg1: i32) -> (i32, i32) {
    %c0_i32 = arith.constant 0 : i32
    %c0_i32_0 = arith.constant 0 : i32
    return %arg0, %c0_i32 : i32, i32
  }
  func.func @transform_1(%arg0: i32, %arg1: i32) -> (i32, i32) {
    %c0_i32 = arith.constant 0 : i32
    %c0_i32_0 = arith.constant 0 : i32
    %c0_i32_1 = arith.constant 0 : i32
    return %c0_i32, %c0_i32_0 : i32, i32
  }
  func.func @transform_2(%arg0: i32, %arg1: i32) -> (i32, i32) {
    %c0_i32 = arith.constant 0 : i32
    %c0_i32_0 = arith.constant 0 : i32
    %c0_i32_1 = arith.constant 0 : i32
    return %c0_i32, %c0_i32_0 : i32, i32
  }
  func.func @transform_3(%arg0: i32, %arg1: i32) -> (i32, i32) {
    %c0_i32 = arith.constant 0 : i32
    %c0_i32_0 = arith.constant 0 : i32
    return %c0_i32, %arg1 : i32, i32
  }
  func.func @transform_4(%arg0: i32, %arg1: i32) -> (i32, i32) {
    %c0_i32 = arith.constant 0 : i32
    %c0_i32_0 = arith.constant 0 : i32
    return %c0_i32, %arg1 : i32, i32
  }
  func.func @transform_5(%arg0: i32, %arg1: i32) -> (i32, i32) {
    %c0_i32 = arith.constant 0 : i32
    %c0_i32_0 = arith.constant 0 : i32
    return %arg1, %c0_i32 : i32, i32
  }
  func.func @transform_6(%arg0: i32, %arg1: i32) -> (i32, i32) {
    %c0_i32 = arith.constant 0 : i32
    %c0_i32_0 = arith.constant 0 : i32
    %c0_i32_1 = arith.constant 0 : i32
    return %c0_i32, %c0_i32_0 : i32, i32
  }
  func.func @transform_7(%arg0: i32, %arg1: i32) -> (i32, i32) {
    %c0_i32 = arith.constant 0 : i32
    %c0_i32_0 = arith.constant 0 : i32
    return %arg0, %c0_i32 : i32, i32
  }
}

</mosaic_0001>

<llo_original>
// kernel: _feed_forward_impl.1
$region0: #{_feed_forward_impl.1}
  #allocation0 [shape = 'u32[]', space=smem, size = 0x4, offset = 0x4, fixed_abs, tag = 'smem constant byte address 0x4 - core index']
  #allocation1 [shape = 'u32[144,128]{1,0:T(1,128)}', space=vmem, size = 0x12000, scoped, tag = 'internal scratch']
  #allocation2 [shape = 'f32[16,32]{1,0:T(8,128)}', space=vmem, size = 0x2000, scoped, tag = 'scratch operand']
  #allocation3 [shape = 'bf16[16,32]{1,0:T(16,128)(2,1)}', space=vmem, size = 0x1000, scoped, tag = 'scratch operand']
  %s0 = inlined_call_operand.vmem [shape: f32[16,32], index: 0, kind: input, shape index: {}]
  %s1 = inlined_call_operand.vmem [shape: f32[1,32], index: 1, kind: input, shape index: {}]
  %s2 = inlined_call_operand.vmem [shape: f32[1,32], index: 2, kind: input, shape index: {}]
  %s3 = inlined_call_operand.vmem [shape: bf16[32,128], index: 3, kind: input, shape index: {}]
  %s4 = inlined_call_operand.vmem [shape: f32[1,128], index: 4, kind: input, shape index: {}]
  %s5 = inlined_call_operand.vmem [shape: bf16[128,32], index: 5, kind: input, shape index: {}]
  %s6 = inlined_call_operand.vmem [shape: f32[1,32], index: 6, kind: input, shape index: {}]
  %s7 = inlined_call_operand.hbm [shape: f32[16,32], index: 7, kind: output, shape index: {}]
  %s8 = sld [smem:[#allocation0]]
  $region46: #{_feed_forward_impl.1} parent=0
    _
  %s10 = ssub.s32 1, %s8
  %s11 = scalar_select 0, %s10, %s8
  $region1: #{_feed_forward_impl.1} parent=0
    #allocation4 [shape = 'u8[8192]{0}', space=vmem, size = 0x2000, scoped, tag = 'output window, operand 0, single buffered']
    #allocation5 [shape = 's32[1]{0}', space=sflag, size = 0x4, scoped, tag = 'scoped memory for _feed_forward_impl.1']
    %12 = vsyncpa [#allocation5], 0
    // Predicated region
    $region2: #{_feed_forward_impl.1} parent=1 // pred_check
      _
    $region3: #{_feed_forward_impl.1} parent=1 // pred_check_branch
      %14 = sbr.rel (0) target = $region5
    $region4: #{_feed_forward_impl.1} parent=1 // pred_region
      _
    $region5: #{_feed_forward_impl.1} parent=1 // pred_fallthru
      _
    // Predicated region
    $region6: #{_feed_forward_impl.1} parent=1 // pred_check
      _
    $region7: #{_feed_forward_impl.1} parent=1 // pred_check_branch
      %16 = sbr.rel (0) target = $region9
    $region8: #{_feed_forward_impl.1} parent=1 // pred_region
      _
    $region9: #{_feed_forward_impl.1} parent=1 // pred_fallthru
      _
    // Predicated region
    $region10: #{_feed_forward_impl.1} parent=1 // pred_check
      _
    $region11: #{_feed_forward_impl.1} parent=1 // pred_check_branch
      %18 = sbr.rel (0) target = $region13
    $region12: #{_feed_forward_impl.1} parent=1 // pred_region
      _
    $region13: #{_feed_forward_impl.1} parent=1 // pred_fallthru
      _
    // Predicated region
    $region14: #{_feed_forward_impl.1} parent=1 // pred_check
      _
    $region15: #{_feed_forward_impl.1} parent=1 // pred_check_branch
      %20 = sbr.rel (0) target = $region17
    $region16: #{_feed_forward_impl.1} parent=1 // pred_region
      _
    $region17: #{_feed_forward_impl.1} parent=1 // pred_fallthru
      _
    // Predicated region
    $region18: #{_feed_forward_impl.1} parent=1 // pred_check
      _
    $region19: #{_feed_forward_impl.1} parent=1 // pred_check_branch
      %22 = sbr.rel (0) target = $region21
    $region20: #{_feed_forward_impl.1} parent=1 // pred_region
      _
    $region21: #{_feed_forward_impl.1} parent=1 // pred_fallthru
      _
    // Predicated region
    $region22: #{_feed_forward_impl.1} parent=1 // pred_check
      _
    $region23: #{_feed_forward_impl.1} parent=1 // pred_check_branch
      %24 = sbr.rel (0) target = $region25
    $region24: #{_feed_forward_impl.1} parent=1 // pred_region
      _
    $region25: #{_feed_forward_impl.1} parent=1 // pred_fallthru
      _
    // Predicated region
    $region26: #{_feed_forward_impl.1} parent=1 // pred_check
      _
    $region27: #{_feed_forward_impl.1} parent=1 // pred_check_branch
      %26 = sbr.rel (0) target = $region29
    $region28: #{_feed_forward_impl.1} parent=1 // pred_region
      _
    $region29: #{_feed_forward_impl.1} parent=1 // pred_fallthru
      _
    %p28 = scmp.eq.s32.totalorder 0, 0
    // Predicated region
    $region30: #{_feed_forward_impl.1} parent=1 // pred_check
      %p29 = pneg %p28
    $region31: #{_feed_forward_impl.1} parent=1 // pred_check_branch
      %31 = sbr.rel (%p29) target = $region33
    $region32: #{_feed_forward_impl.1} parent=1 // pred_region
      %v32 = vld [vmem:[%s0] sm:$0xff]
      %v33 = vld [vmem:[%s0 + $0x8] sm:$0xff]
      %vm34 = vcmask 261120
      %v35 = vsel %vm34, %v32, 0.0
      %36 = vadd.xlane.f32.xlu0 %v35
      %v37 = vpop.xlane.xlu0 %36
      %v38 = vsel %vm34, %v33, 0.0
      %39 = vadd.xlane.f32.xlu0 %v38
      %v40 = vpop.xlane.xlu0 %39
      %v41 = vrcp.pop 32.0
      %v42 = vmul.f32 %v37, %v41
      %v43 = vmul.f32 %v40, %v41
      %v44 = vsub.f32 %v32, %v42
      %v45 = vsub.f32 %v33, %v43
      %v46 = vmul.f32 %v44, %v44
      %v47 = vmul.f32 %v45, %v45
      %v48 = vsel %vm34, %v46, 0.0
      %49 = vadd.xlane.f32.xlu0 %v48
      %v50 = vpop.xlane.xlu0 %49
      %v51 = vsel %vm34, %v47, 0.0
      %52 = vadd.xlane.f32.xlu0 %v51
      %v53 = vpop.xlane.xlu0 %52
      %v54 = vmul.f32 %v50, %v41
      %v55 = vmul.f32 %v53, %v41
      %v56 = vadd.f32 %v54, 1e-05
      %v57 = vadd.f32 %v55, 1e-05
      %v58 = vrsqrt.pop %v56
      %v59 = vrsqrt.pop %v57
      %v60 = vmul.f32 %v44, %v58
      %v61 = vmul.f32 %v45, %v59
      %v62 = vld [vmem:[%s1] sm:$0x1]
      %v64 = vlaneseq
      %v65 = vshrl.u32 %v64, 7
      %v66 = vsub.s32 0, %v65
      %v67 = vrot.slane %v62, %v66
      %v69 = vmul.f32 %v60, %v67
      %v70 = vmul.f32 %v61, %v67
      %v71 = vld [vmem:[%s2] sm:$0x1]
      %v73 = vlaneseq
      %v74 = vshrl.u32 %v73, 7
      %v75 = vsub.s32 0, %v74
      %v76 = vrot.slane %v71, %v75
      %v78 = vadd.f32 %v69, %v76
      %v79 = vadd.f32 %v70, %v76
      %v80 = vpack.c.bf16 %v79, %v78
      %81 = vst.msk [vmem:[#allocation3] sm:$0xff] %vm34, %v80
      %82 = vst.msk [vmem:[#allocation2] sm:$0xff] %vm34, 0.0
      %83 = vst.msk [vmem:[#allocation2 + $0x8] sm:$0xff] %vm34, 0.0
    $region33: #{_feed_forward_impl.1} parent=1 // pred_fallthru
      _
    %v84 = vld [vmem:[#allocation3] sm:$0xff]
    %v85 = vld [vmem:[%s3] sm:$0xf]
    %v86 = vld [vmem:[%s3 + $0x4] sm:$0xf]
    %v87 = vld [vmem:[%s3 + $0x8] sm:$0xf]
    %v88 = vld [vmem:[%s3 + $0xc] sm:$0xf]
    %v89 = vld [vmem:[%s4] sm:$0x1]
    %v91 = vlaneseq
    %v92 = vshrl.u32 %v91, 7
    %v93 = vsub.s32 0, %v92
    %v94 = vrot.slane %v89, %v93
    %v100 = vunpack.c.l.b16 %v85
    %v101 = vunpack.c.l.b16 %v86
    %v102 = vunpack.c.l.b16 %v87
    %v103 = vunpack.c.l.b16 %v88
    %v104 = vpack.c.b16 %v101, %v100
    %v105 = vpack.c.b16 %v103, %v102
    %vm108 = vcmask 261120
    %v110 = vsel %vm108, %v84, 0
    %112 = vmatprep.subr.bf16.mxu0 0
    %113 = vmatpush1.bf16.msra.mxu0 %v104
    %114 = vmatprep.subr.bf16.mxu0 0
    %115 = vmatpush1.bf16.msra.mxu0 %v105
    %116 = vmatprep.subr.bf16.mxu0 0
    %117 = vmatpush1.bf16.msra.mxu0 0
    %118 = vmatprep.subr.bf16.mxu0 0
    %119 = vmatpush1.bf16.msra.mxu0 0
    %120 = vmatprep.subr.bf16.mxu0 0
    %121 = vmatpush1.bf16.msra.mxu0 0
    %122 = vmatprep.subr.bf16.mxu0 0
    %123 = vmatpush1.bf16.msra.mxu0 0
    %124 = vmatprep.subr.bf16.mxu0 0
    %125 = vmatpush1.bf16.msra.mxu0 0
    %126 = vmatprep.subr.bf16.mxu0 0
    %127 = vmatpush1.bf16.msra.mxu0 0
    %128 = vmatprep.subr.bf16.mxu0 0
    %129 = vmatpush1.bf16.msra.mxu0 0
    %130 = vmatprep.subr.bf16.mxu0 0
    %131 = vmatpush1.bf16.msra.mxu0 0
    %132 = vmatprep.subr.bf16.mxu0 0
    %133 = vmatpush1.bf16.msra.mxu0 0
    %134 = vmatprep.subr.bf16.mxu0 0
    %135 = vmatpush1.bf16.msra.mxu0 0
    %136 = vmatprep.subr.bf16.mxu0 0
    %137 = vmatpush1.bf16.msra.mxu0 0
    %138 = vmatprep.subr.bf16.mxu0 0
    %139 = vmatpush1.bf16.msra.mxu0 0
    %140 = vmatprep.subr.bf16.mxu0 0
    %141 = vmatpush1.bf16.msra.mxu0 0
    %142 = vmatprep.subr.bf16.mxu0 0
    %143 = vmatpush1.bf16.msra.mxu0 0
    %144 = vmatprep.mubr.bf16.mxu0 0
    %145 = vmatmul.mubr.bf16.gmra.mrb[0].mxu0 %v110
    %v146 = vpop.f32.mrb[0].mxu0
    %v147 = vadd.f32 %v94, %v146
    %v148 = vpop.f32.mrb[0].mxu0
    %v149 = vpop.f32.mrb[0].mxu0
    %v150 = vadd.f32 %v94, %v149
    %v151 = vpop.f32.mrb[0].mxu0
    %152 = vdwg.mxu0
    %v153 = vmul.f32 %v147, 0.5
    %v154 = vmul.f32 %v150, 0.5
    %v155 = vmul.f32 %v147, 0.70710677
    %v156 = vmul.f32 %v150, 0.70710677
    %vm157 = vcmp.ge.f32.partialorder %v155, 0.0
    %vm158 = vcmp.ge.f32.partialorder %v156, 0.0
    %v159 = vsel %vm157, 1.0, -1.0
    %v160 = vsel %vm158, 1.0, -1.0
    %v161 = vand.u32 2147483647, %v155
    %v162 = vand.u32 2147483647, %v156
    %v163 = vmul.f32 %v161, 0.3275911
    %v164 = vmul.f32 %v162, 0.3275911
    %v165 = vadd.f32 %v163, 1.0
    %v166 = vadd.f32 %v164, 1.0
    %v167 = vrcp.pop %v165
    %v168 = vrcp.pop %v166
    %v169 = vmul.f32 %v167, 1.0614054
    %v170 = vmul.f32 %v168, 1.0614054
    %v171 = vadd.f32 %v169, -1.4531521
    %v172 = vadd.f32 %v170, -1.4531521
    %v173 = vmul.f32 %v171, %v167
    %v174 = vmul.f32 %v172, %v168
    %v175 = vadd.f32 %v173, 1.4214138
    %v176 = vadd.f32 %v174, 1.4214138
    %v177 = vmul.f32 %v175, %v167
    %v178 = vmul.f32 %v176, %v168
    %v179 = vadd.f32 %v177, -0.28449672
    %v180 = vadd.f32 %v178, -0.28449672
    %v181 = vmul.f32 %v179, %v167
    %v182 = vmul.f32 %v180, %v168
    %v183 = vadd.f32 %v181, 0.2548296
    %v184 = vadd.f32 %v182, 0.2548296
    %v185 = vmul.f32 %v183, %v167
    %v186 = vmul.f32 %v184, %v168
    %v187 = vsub.f32 0.0, %v161
    %v188 = vsub.f32 0.0, %v162
    %v189 = vmul.f32 %v187, %v161
    %v190 = vmul.f32 %v188, %v162
    %v191 = vmul.f32 %v189, 1.442695
    %v192 = vpow.pop %v191
    %v193 = vmul.f32 %v190, 1.442695
    %v194 = vpow.pop %v193
    %v195 = vmul.f32 %v185, %v192
    %v196 = vmul.f32 %v186, %v194
    %v197 = vsub.f32 1.0, %v195
    %v198 = vsub.f32 1.0, %v196
    %v199 = vmul.f32 %v159, %v197
    %v200 = vmul.f32 %v160, %v198
    %v201 = vadd.f32 %v199, 1.0
    %v202 = vadd.f32 %v200, 1.0
    %v203 = vmul.f32 %v153, %v201
    %v204 = vmul.f32 %v154, %v202
    %v205 = vld [vmem:[#allocation2] sm:$0xff]
    %v206 = vld [vmem:[#allocation2 + $0x8] sm:$0xff]
    %v207 = vpack.c.bf16 %v204, %v203
    %v208 = vld [vmem:[%s5] sm:$0xf]
    %v209 = vld [vmem:[%s5 + $0x4] sm:$0xf]
    %v210 = vld [vmem:[%s5 + $0x8] sm:$0xf]
    %v211 = vld [vmem:[%s5 + $0xc] sm:$0xf]
    %v212 = vld [vmem:[%s5 + $0x10] sm:$0xf]
    %v213 = vld [vmem:[%s5 + $0x14] sm:$0xf]
    %v214 = vld [vmem:[%s5 + $0x18] sm:$0xf]
    %v215 = vld [vmem:[%s5 + $0x1c] sm:$0xf]
    %v216 = vld [vmem:[%s5 + $0x20] sm:$0xf]
    %v217 = vld [vmem:[%s5 + $0x24] sm:$0xf]
    %v218 = vld [vmem:[%s5 + $0x28] sm:$0xf]
    %v219 = vld [vmem:[%s5 + $0x2c] sm:$0xf]
    %v220 = vld [vmem:[%s5 + $0x30] sm:$0xf]
    %v221 = vld [vmem:[%s5 + $0x34] sm:$0xf]
    %v222 = vld [vmem:[%s5 + $0x38] sm:$0xf]
    %v223 = vld [vmem:[%s5 + $0x3c] sm:$0xf]
    %v240 = vunpack.c.l.b16 %v208
    %v241 = vunpack.c.l.b16 %v209
    %v242 = vunpack.c.l.b16 %v210
    %v243 = vunpack.c.l.b16 %v211
    %v244 = vunpack.c.l.b16 %v212
    %v245 = vunpack.c.l.b16 %v213
    %v246 = vunpack.c.l.b16 %v214
    %v247 = vunpack.c.l.b16 %v215
    %v248 = vunpack.c.l.b16 %v216
    %v249 = vunpack.c.l.b16 %v217
    %v250 = vunpack.c.l.b16 %v218
    %v251 = vunpack.c.l.b16 %v219
    %v252 = vunpack.c.l.b16 %v220
    %v253 = vunpack.c.l.b16 %v221
    %v254 = vunpack.c.l.b16 %v222
    %v255 = vunpack.c.l.b16 %v223
    %v256 = vpack.c.b16 %v241, %v240
    %v257 = vpack.c.b16 %v243, %v242
    %v258 = vpack.c.b16 %v245, %v244
    %v259 = vpack.c.b16 %v247, %v246
    %v260 = vpack.c.b16 %v249, %v248
    %v261 = vpack.c.b16 %v251, %v250
    %v262 = vpack.c.b16 %v253, %v252
    %v263 = vpack.c.b16 %v255, %v254
    %272 = vmatprep.subr.bf16.mxu0 0
    %273 = vmatpush1.bf16.msra.mxu0 %v256
    %274 = vmatprep.subr.bf16.mxu0 0
    %275 = vmatpush1.bf16.msra.mxu0 %v257
    %276 = vmatprep.subr.bf16.mxu0 0
    %277 = vmatpush1.bf16.msra.mxu0 %v258
    %278 = vmatprep.subr.bf16.mxu0 0
    %279 = vmatpush1.bf16.msra.mxu0 %v259
    %280 = vmatprep.subr.bf16.mxu0 0
    %281 = vmatpush1.bf16.msra.mxu0 %v260
    %282 = vmatprep.subr.bf16.mxu0 0
    %283 = vmatpush1.bf16.msra.mxu0 %v261
    %284 = vmatprep.subr.bf16.mxu0 0
    %285 = vmatpush1.bf16.msra.mxu0 %v262
    %286 = vmatprep.subr.bf16.mxu0 0
    %287 = vmatpush1.bf16.msra.mxu0 %v263
    %288 = vmatprep.subr.bf16.mxu0 0
    %289 = vmatpush1.bf16.msra.mxu0 0
    %290 = vmatprep.subr.bf16.mxu0 0
    %291 = vmatpush1.bf16.msra.mxu0 0
    %292 = vmatprep.subr.bf16.mxu0 0
    %293 = vmatpush1.bf16.msra.mxu0 0
    %294 = vmatprep.subr.bf16.mxu0 0
    %295 = vmatpush1.bf16.msra.mxu0 0
    %296 = vmatprep.subr.bf16.mxu0 0
    %297 = vmatpush1.bf16.msra.mxu0 0
    %298 = vmatprep.subr.bf16.mxu0 0
    %299 = vmatpush1.bf16.msra.mxu0 0
    %300 = vmatprep.subr.bf16.mxu0 0
    %301 = vmatpush1.bf16.msra.mxu0 0
    %302 = vmatprep.subr.bf16.mxu0 0
    %303 = vmatpush1.bf16.msra.mxu0 0
    %304 = vmatprep.mubr.bf16.mxu0 0
    %305 = vmatmul.mubr.bf16.gmra.mrb[0].mxu0 %v207
    %v306 = vpop.f32.mrb[0].mxu0
    %v307 = vadd.f32 0.0, %v306
    %v308 = vpop.f32.mrb[0].mxu0
    %v309 = vpop.f32.mrb[0].mxu0
    %v310 = vadd.f32 0.0, %v309
    %v311 = vpop.f32.mrb[0].mxu0
    %312 = vdwg.mxu0
    %v313 = vadd.f32 %v205, %v307
    %v314 = vadd.f32 %v206, %v310
    %315 = vst.msk [vmem:[#allocation2] sm:$0xff] %vm108, %v313
    %316 = vst.msk [vmem:[#allocation2 + $0x8] sm:$0xff] %vm108, %v314
    // Predicated region
    $region34: #{_feed_forward_impl.1} parent=1 // pred_check
      %p317 = pneg %p28
    $region35: #{_feed_forward_impl.1} parent=1 // pred_check_branch
      %319 = sbr.rel (%p317) target = $region37
    $region36: #{_feed_forward_impl.1} parent=1 // pred_region
      %v320 = vld [vmem:[#allocation2] sm:$0xff]
      %v321 = vld [vmem:[#allocation2 + $0x8] sm:$0xff]
      %v322 = vld [vmem:[%s6] sm:$0x1]
      %v324 = vlaneseq
      %v325 = vshrl.u32 %v324, 7
      %v326 = vsub.s32 0, %v325
      %v327 = vrot.slane %v322, %v326
      %v329 = vadd.f32 %v320, %v327
      %v330 = vadd.f32 %v321, %v327
      %331 = vst.msk [vmem:[#allocation4] sm:$0xff] %vm108, %v329
      %332 = vst.msk [vmem:[#allocation4 + $0x8] sm:$0xff] %vm108, %v330
    $region37: #{_feed_forward_impl.1} parent=1 // pred_fallthru
      _
    // Predicated region
    $region38: #{_feed_forward_impl.1} parent=1 // pred_check
      _
    $region39: #{_feed_forward_impl.1} parent=1 // pred_check_branch
      %334 = sbr.rel (0) target = $region41
    $region40: #{_feed_forward_impl.1} parent=1 // pred_region
      %s336 = ssub.s32 256, 256
      %337 = vsyncadd [#allocation5], %s336
      %s338 = sshll.u32 [#allocation4], 4
      %s339 = int_to_ptr.vmem [resolvable:$true] %s338
      %344 = dma.vmem_to_hbm [thread:$0]  %s339, 256, %s7, [#allocation5], 128, 128, 8
    $region41: #{_feed_forward_impl.1} parent=1 // pred_fallthru
      _
    // Predicated region
    $region42: #{_feed_forward_impl.1} parent=1 // pred_check
      _
    $region43: #{_feed_forward_impl.1} parent=1 // pred_check_branch
      %346 = sbr.rel (0) target = $region45
    $region44: #{_feed_forward_impl.1} parent=1 // pred_region
      %347 = dma.done [#allocation5], 256
    $region45: #{_feed_forward_impl.1} parent=1 // pred_fallthru
      _
    %348 = vsyncpa [#allocation5], 1

</llo_original>
